<compile_context>
chip_gen: v5e
topology: v5e:2x2
jax: 0.10.0
libtpu: 0.0.40
codegen_flags: <defaults>
</compile_context>

<pallas_src>
import functools

import jax
import jax.numpy as jnp
from jax.experimental import pallas as pl
from jax.experimental.pallas import tpu as pltpu

_SUBLANE = 8    # f32 sublane group
_LANE = 128     # lane width


def _round_up(x, m):
    return -(-x // m) * m


def _fused_mlp_kernel(x_ref, w_ref, b_ref, o_ref, *, num_layers, p):
    """x_ref: (M, P) f32.  w_ref: (num_layers*P, P) bf16 slab.
    b_ref: (num_layers, P) f32 slab.  o_ref: (M, P) f32."""
    h = x_ref[...]                                        # f32 activations
    for i in range(num_layers):
        w = w_ref[i * p:(i + 1) * p, :]                   # static slice, bf16 (P, P)
        b = b_ref[i:i + 1, :]                             # (1, P) f32, broadcasts over M
        h = jnp.dot(h.astype(jnp.bfloat16), w,
                    preferred_element_type=jnp.float32) + b
        if i < num_layers - 1:                            # hidden layers: ReLU
            h = jnp.maximum(h, 0.0)
    o_ref[...] = h.astype(o_ref.dtype)                    # last layer: linear only


def init_params(layer_arch, key):
    """Deterministic xavier_uniform weights, zero bias (mirrors the PyTorch init).

    Weights are stored transposed, (in_features, out_features), so the kernel
    computes h @ W directly (nn.Linear stores (out, in) and does x @ W^T)."""
    params = []
    for i in range(len(layer_arch) - 1):
        fan_in, fan_out = layer_arch[i], layer_arch[i + 1]
        key, sub = jax.random.split(key)
        bound = jnp.sqrt(6.0 / (fan_in + fan_out))
        w_t = jax.random.uniform(
            sub, (fan_in, fan_out), dtype=jnp.float32, minval=-bound, maxval=bound
        )
        b = jnp.zeros((fan_out,), dtype=jnp.float32)
        params.append((w_t, b))
    return params


def prepare_params(params):
    """One-time layout prep (outside the hot path):

    * every layer dim is zero-padded to a common 128-lane multiple P,
    * all weights are packed into ONE bf16 slab (num_layers*P, P),
    * all biases are packed into ONE f32 slab (num_layers, P).
    Returns (w_slab, b_slab, true_out_features)."""
    dims = [params[0][0].shape[0]] + [w.shape[1] for w, _ in params]
    p = _round_up(max(dims), _LANE)
    num_layers = len(params)
    w_slab = jnp.zeros((num_layers * p, p), dtype=jnp.bfloat16)
    b_slab = jnp.zeros((num_layers, p), dtype=jnp.float32)
    for i, (w_t, b) in enumerate(params):
        k, n = w_t.shape
        w_slab = w_slab.at[i * p:i * p + k, :n].set(w_t.astype(jnp.bfloat16))
        b_slab = b_slab.at[i, :n].set(b)
    return w_slab, b_slab, params[-1][0].shape[1]


@functools.partial(jax.jit, static_argnames=("n_out",))
def neural_net_forward(x, w_slab, b_slab, *, n_out):
    """MLP forward: hidden layers use ReLU, last layer is linear only."""
    num_layers, p = b_slab.shape
    batch, k = x.shape
    m_pad = _round_up(batch, _SUBLANE)
    # Pad batch to a sublane group and features to the lane-dense width P.
    x_pad = jnp.zeros((m_pad, p), dtype=jnp.float32).at[:batch, :k].set(x)

    flops = 2 * m_pad * p * p * num_layers
    bytes_accessed = (x_pad.size * 4 + w_slab.size * 2 + b_slab.size * 4
                      + m_pad * p * 4)

    kernel = functools.partial(_fused_mlp_kernel, num_layers=num_layers, p=p)
    out_pad = pl.pallas_call(
        kernel,
        out_shape=jax.ShapeDtypeStruct((m_pad, p), jnp.float32),
        in_specs=[
            pl.BlockSpec(memory_space=pltpu.MemorySpace.VMEM),  # x
            pl.BlockSpec(memory_space=pltpu.MemorySpace.VMEM),  # weight slab
            pl.BlockSpec(memory_space=pltpu.MemorySpace.VMEM),  # bias slab
        ],
        out_specs=pl.BlockSpec(memory_space=pltpu.MemorySpace.VMEM),
        compiler_params=pltpu.CompilerParams(),
        cost_estimate=pl.CostEstimate(
            flops=flops, transcendentals=0, bytes_accessed=bytes_accessed),
    )(x_pad, w_slab, b_slab)
    return out_pad[:batch, :n_out]


if __name__ == "__main__":
    layer_arch = [16, 32, 32, 8]   # matches NeuralNet(layer_arch)
    batch = 4

    key = jax.random.PRNGKey(0)
    key, xkey = jax.random.split(key)
    x = jax.random.normal(xkey, (batch, layer_arch[0]), dtype=jnp.float32)

    params = init_params(layer_arch, key)
    w_slab, b_slab, n_out = prepare_params(params)

    out = neural_net_forward(x, w_slab, b_slab, n_out=n_out)
    jax.block_until_ready(out)

    # Pure-JAX reference mirroring the kernel's math (bf16 matmul operands,
    # f32 accumulation and epilogue) on the unpadded params.
    ref = x
    for i, (w_t, b) in enumerate(params):
        ref = jnp.dot(ref.astype(jnp.bfloat16), w_t.astype(jnp.bfloat16),
                      preferred_element_type=jnp.float32) + b
        if i < len(params) - 1:
            ref = jnp.maximum(ref, 0.0)

    assert out.shape == (batch, layer_arch[-1])
    assert jnp.allclose(out, ref, atol=1e-3, rtol=1e-3)

    print("KERNEL_OK")
</pallas_src>

<mosaic_0001>
module attributes {stable_mosaic.version = 11 : i64} {
  func.func @_fused_mlp_kernel(%arg0: memref<8x128xf32, #tpu.memory_space<vmem>>, %arg1: memref<384x128xbf16, #tpu.memory_space<vmem>>, %arg2: memref<3x128xf32, #tpu.memory_space<vmem>>, %arg3: memref<8x128xf32, #tpu.memory_space<vmem>>) attributes {dimension_semantics = [], scalar_prefetch = 0 : i64, scratch_operands = 0 : i64, tpu.core_type = #tpu.core_type<tc>} {
    %c0 = arith.constant 0 : index
    %c0_0 = arith.constant 0 : index
    %0 = vector.load %arg0[%c0, %c0_0] : memref<8x128xf32, #tpu.memory_space<vmem>>, vector<8x128xf32>
    %c0_1 = arith.constant 0 : index
    %c0_2 = arith.constant 0 : index
    %1 = vector.load %arg1[%c0_1, %c0_2] : memref<384x128xbf16, #tpu.memory_space<vmem>>, vector<128x128xbf16>
    %c0_3 = arith.constant 0 : index
    %c0_4 = arith.constant 0 : index
    %2 = vector.load %arg2[%c0_3, %c0_4] : memref<3x128xf32, #tpu.memory_space<vmem>>, vector<1x128xf32>
    %3 = arith.truncf %0 : vector<8x128xf32> to vector<8x128xbf16>
    %cst = arith.constant dense<0.000000e+00> : vector<8x128xf32>
    %4 = tpu.matmul %3, %1, %cst {dimension_numbers = #tpu.dot_dimension_numbers<[1], [0], [0], [1], [0, 0, 1, 1], [], []>} : vector<8x128xbf16>, vector<128x128xbf16>, vector<8x128xf32> -> vector<8x128xf32>
    %5 = vector.broadcast %2 : vector<1x128xf32> to vector<8x128xf32>
    %6 = arith.addf %4, %5 : vector<8x128xf32>
    %cst_5 = arith.constant 0.000000e+00 : f32
    %7 = vector.broadcast %cst_5 : f32 to vector<8x128xf32>
    %8 = arith.maximumf %6, %7 : vector<8x128xf32>
    %c128 = arith.constant 128 : index
    %c0_6 = arith.constant 0 : index
    %9 = vector.load %arg1[%c128, %c0_6] : memref<384x128xbf16, #tpu.memory_space<vmem>>, vector<128x128xbf16>
    %c1 = arith.constant 1 : index
    %c0_7 = arith.constant 0 : index
    %10 = vector.load %arg2[%c1, %c0_7] : memref<3x128xf32, #tpu.memory_space<vmem>>, vector<1x128xf32>
    %11 = arith.truncf %8 : vector<8x128xf32> to vector<8x128xbf16>
    %cst_8 = arith.constant dense<0.000000e+00> : vector<8x128xf32>
    %12 = tpu.matmul %11, %9, %cst_8 {dimension_numbers = #tpu.dot_dimension_numbers<[1], [0], [0], [1], [0, 0, 1, 1], [], []>} : vector<8x128xbf16>, vector<128x128xbf16>, vector<8x128xf32> -> vector<8x128xf32>
    %13 = vector.broadcast %10 : vector<1x128xf32> to vector<8x128xf32>
    %14 = arith.addf %12, %13 : vector<8x128xf32>
    %cst_9 = arith.constant 0.000000e+00 : f32
    %15 = vector.broadcast %cst_9 : f32 to vector<8x128xf32>
    %16 = arith.maximumf %14, %15 : vector<8x128xf32>
    %c256 = arith.constant 256 : index
    %c0_10 = arith.constant 0 : index
    %17 = vector.load %arg1[%c256, %c0_10] : memref<384x128xbf16, #tpu.memory_space<vmem>>, vector<128x128xbf16>
    %c2 = arith.constant 2 : index
    %c0_11 = arith.constant 0 : index
    %18 = vector.load %arg2[%c2, %c0_11] : memref<3x128xf32, #tpu.memory_space<vmem>>, vector<1x128xf32>
    %19 = arith.truncf %16 : vector<8x128xf32> to vector<8x128xbf16>
    %cst_12 = arith.constant dense<0.000000e+00> : vector<8x128xf32>
    %20 = tpu.matmul %19, %17, %cst_12 {dimension_numbers = #tpu.dot_dimension_numbers<[1], [0], [0], [1], [0, 0, 1, 1], [], []>} : vector<8x128xbf16>, vector<128x128xbf16>, vector<8x128xf32> -> vector<8x128xf32>
    %21 = vector.broadcast %18 : vector<1x128xf32> to vector<8x128xf32>
    %22 = arith.addf %20, %21 : vector<8x128xf32>
    %c0_13 = arith.constant 0 : index
    %c0_14 = arith.constant 0 : index
    %23 = vector.load %arg3[%c0_13, %c0_14] : memref<8x128xf32, #tpu.memory_space<vmem>>, vector<8x128xf32>
    tpu.vector_store %arg3[%c0_13, %c0_14], %22 {strides = array<i32>} : memref<8x128xf32, #tpu.memory_space<vmem>>, vector<8x128xf32>,
    return
  }
}

</mosaic_0001>

<llo_original>
// kernel: neural_net_forward.1
$region0: #{neural_net_forward.1}
  #allocation0 [shape = 'u32[]', space=smem, size = 0x4, offset = 0x4, fixed_abs, tag = 'smem constant byte address 0x4 - core index']
  #allocation1 [shape = 'u32[72,128]{1,0:T(1,128)}', space=vmem, size = 0x9000, scoped, tag = 'internal scratch']
  %s0 = inlined_call_operand.vmem [shape: f32[8,128], index: 0, kind: input, shape index: {}]
  %s1 = inlined_call_operand.hbm [shape: bf16[384,128], index: 1, kind: input, shape index: {}]
  %s2 = inlined_call_operand.vmem [shape: f32[3,128], index: 2, kind: input, shape index: {}]
  %s3 = inlined_call_operand.vmem [shape: f32[8,128], index: 3, kind: output, shape index: {}]
  %s4 = sld [smem:[#allocation0]]
  $region26: #{neural_net_forward.1} parent=0
    _
  %s6 = ssub.s32 1, %s4
  %s7 = scalar_select 0, %s6, %s4
  $region1: #{neural_net_forward.1} parent=0
    #allocation2 [shape = 'u8[98304]{0}', space=vmem, size = 0x18000, scoped, tag = 'input window, operand 1, single buffered']
    #allocation3 [shape = 's32[1]{0}', space=sflag, size = 0x4, scoped, tag = 'scoped memory for neural_net_forward.1']
    %8 = vsyncpa [#allocation3], 0
    // Predicated region
    $region2: #{neural_net_forward.1} parent=1 // pred_check
      _
    $region3: #{neural_net_forward.1} parent=1 // pred_check_branch
      %10 = sbr.rel (0) target = $region5
    $region4: #{neural_net_forward.1} parent=1 // pred_region
      _
    $region5: #{neural_net_forward.1} parent=1 // pred_fallthru
      _
    // Predicated region
    $region6: #{neural_net_forward.1} parent=1 // pred_check
      _
    $region7: #{neural_net_forward.1} parent=1 // pred_check_branch
      %12 = sbr.rel (0) target = $region9
    $region8: #{neural_net_forward.1} parent=1 // pred_region
      %14 = vsyncadd [#allocation3], 0
      %s15 = sshll.u32 %s1, 4
      %s16 = int_to_ptr.hbm [resolvable:$true] %s15
      %s17 = sshll.u32 [#allocation2], 4
      %s18 = int_to_ptr.vmem [resolvable:$true] %s17
      %23 = dma.hbm_to_vmem [thread:$0]  %s16, 3072, %s18, [#allocation3], 64, 64, 4
    $region9: #{neural_net_forward.1} parent=1 // pred_fallthru
      _
    // Predicated region
    $region10: #{neural_net_forward.1} parent=1 // pred_check
      _
    $region11: #{neural_net_forward.1} parent=1 // pred_check_branch
      %25 = sbr.rel (0) target = $region13
    $region12: #{neural_net_forward.1} parent=1 // pred_region
      _
    $region13: #{neural_net_forward.1} parent=1 // pred_fallthru
      _
    // Predicated region
    $region14: #{neural_net_forward.1} parent=1 // pred_check
      _
    $region15: #{neural_net_forward.1} parent=1 // pred_check_branch
      %27 = sbr.rel (0) target = $region17
    $region16: #{neural_net_forward.1} parent=1 // pred_region
      %29 = dma.done [#allocation3], 3072
    $region17: #{neural_net_forward.1} parent=1 // pred_fallthru
      _
    %v30 = vld [vmem:[%s0] sm:$0xff]
    %v31 = vld [vmem:[#allocation2] sm:$0xf]
    %v32 = vld [vmem:[#allocation2 + $0x4] sm:$0xf]
    %v33 = vld [vmem:[#allocation2 + $0x8] sm:$0xf]
    %v34 = vld [vmem:[#allocation2 + $0xc] sm:$0xf]
    %v35 = vld [vmem:[#allocation2 + $0x10] sm:$0xf]
    %v36 = vld [vmem:[#allocation2 + $0x14] sm:$0xf]
    %v37 = vld [vmem:[#allocation2 + $0x18] sm:$0xf]
    %v38 = vld [vmem:[#allocation2 + $0x1c] sm:$0xf]
    %v39 = vld [vmem:[#allocation2 + $0x20] sm:$0xf]
    %v40 = vld [vmem:[#allocation2 + $0x24] sm:$0xf]
    %v41 = vld [vmem:[#allocation2 + $0x28] sm:$0xf]
    %v42 = vld [vmem:[#allocation2 + $0x2c] sm:$0xf]
    %v43 = vld [vmem:[#allocation2 + $0x30] sm:$0xf]
    %v44 = vld [vmem:[#allocation2 + $0x34] sm:$0xf]
    %v45 = vld [vmem:[#allocation2 + $0x38] sm:$0xf]
    %v46 = vld [vmem:[#allocation2 + $0x3c] sm:$0xf]
    %v47 = vld [vmem:[%s2] sm:$0x1]
    %v48 = vpack.c.bf16 %v30, %v30
    %v49 = vperm.slane %v47, 0
    %v66 = vunpack.c.l.b16 %v31
    %v67 = vunpack.c.l.b16 %v32
    %v68 = vunpack.c.l.b16 %v33
    %v69 = vunpack.c.l.b16 %v34
    %v70 = vunpack.c.l.b16 %v35
    %v71 = vunpack.c.l.b16 %v36
    %v72 = vunpack.c.l.b16 %v37
    %v73 = vunpack.c.l.b16 %v38
    %v74 = vunpack.c.l.b16 %v39
    %v75 = vunpack.c.l.b16 %v40
    %v76 = vunpack.c.l.b16 %v41
    %v77 = vunpack.c.l.b16 %v42
    %v78 = vunpack.c.l.b16 %v43
    %v79 = vunpack.c.l.b16 %v44
    %v80 = vunpack.c.l.b16 %v45
    %v81 = vunpack.c.l.b16 %v46
    %v82 = vpack.c.b16 %v67, %v66
    %v83 = vpack.c.b16 %v69, %v68
    %v84 = vpack.c.b16 %v71, %v70
    %v85 = vpack.c.b16 %v73, %v72
    %v86 = vpack.c.b16 %v75, %v74
    %v87 = vpack.c.b16 %v77, %v76
    %v88 = vpack.c.b16 %v79, %v78
    %v89 = vpack.c.b16 %v81, %v80
    %98 = vmatpush.bf16.msra.mxu0 %v89
    %99 = vmatpush.bf16.msra.mxu0 %v88
    %100 = vmatpush.bf16.msra.mxu0 %v87
    %101 = vmatpush.bf16.msra.mxu0 %v86
    %102 = vmatpush.bf16.msra.mxu0 %v85
    %103 = vmatpush.bf16.msra.mxu0 %v84
    %104 = vmatpush.bf16.msra.mxu0 %v83
    %105 = vmatpush.bf16.msra.mxu0 %v82
    %106 = vmatmul.bf16.gmra.mxu0 %v48
    %v107 = vpop.f32.mrf.mxu0
    %v108 = vadd.f32 %v49, %v107
    %v109 = vpop.f32.mrf.mxu0
    %110 = vdwg.mxu0
    %v111 = vmax.f32 %v108, 0.0
    %v112 = vld [vmem:[#allocation2 + $0x40] sm:$0xf]
    %v113 = vld [vmem:[#allocation2 + $0x44] sm:$0xf]
    %v114 = vld [vmem:[#allocation2 + $0x48] sm:$0xf]
    %v115 = vld [vmem:[#allocation2 + $0x4c] sm:$0xf]
    %v116 = vld [vmem:[#allocation2 + $0x50] sm:$0xf]
    %v117 = vld [vmem:[#allocation2 + $0x54] sm:$0xf]
    %v118 = vld [vmem:[#allocation2 + $0x58] sm:$0xf]
    %v119 = vld [vmem:[#allocation2 + $0x5c] sm:$0xf]
    %v120 = vld [vmem:[#allocation2 + $0x60] sm:$0xf]
    %v121 = vld [vmem:[#allocation2 + $0x64] sm:$0xf]
    %v122 = vld [vmem:[#allocation2 + $0x68] sm:$0xf]
    %v123 = vld [vmem:[#allocation2 + $0x6c] sm:$0xf]
    %v124 = vld [vmem:[#allocation2 + $0x70] sm:$0xf]
    %v125 = vld [vmem:[#allocation2 + $0x74] sm:$0xf]
    %v126 = vld [vmem:[#allocation2 + $0x78] sm:$0xf]
    %v127 = vld [vmem:[#allocation2 + $0x7c] sm:$0xf]
    %v128 = vld [vmem:[%s2 + $0x1] sm:$0x1]
    %v129 = vpack.c.bf16 %v111, %v111
    %v130 = vperm.slane %v128, 0
    %v147 = vunpack.c.l.b16 %v112
    %v148 = vunpack.c.l.b16 %v113
    %v149 = vunpack.c.l.b16 %v114
    %v150 = vunpack.c.l.b16 %v115
    %v151 = vunpack.c.l.b16 %v116
    %v152 = vunpack.c.l.b16 %v117
    %v153 = vunpack.c.l.b16 %v118
    %v154 = vunpack.c.l.b16 %v119
    %v155 = vunpack.c.l.b16 %v120
    %v156 = vunpack.c.l.b16 %v121
    %v157 = vunpack.c.l.b16 %v122
    %v158 = vunpack.c.l.b16 %v123
    %v159 = vunpack.c.l.b16 %v124
    %v160 = vunpack.c.l.b16 %v125
    %v161 = vunpack.c.l.b16 %v126
    %v162 = vunpack.c.l.b16 %v127
    %v163 = vpack.c.b16 %v148, %v147
    %v164 = vpack.c.b16 %v150, %v149
    %v165 = vpack.c.b16 %v152, %v151
    %v166 = vpack.c.b16 %v154, %v153
    %v167 = vpack.c.b16 %v156, %v155
    %v168 = vpack.c.b16 %v158, %v157
    %v169 = vpack.c.b16 %v160, %v159
    %v170 = vpack.c.b16 %v162, %v161
    %179 = vmatpush.bf16.msra.mxu0 %v170
    %180 = vmatpush.bf16.msra.mxu0 %v169
    %181 = vmatpush.bf16.msra.mxu0 %v168
    %182 = vmatpush.bf16.msra.mxu0 %v167
    %183 = vmatpush.bf16.msra.mxu0 %v166
    %184 = vmatpush.bf16.msra.mxu0 %v165
    %185 = vmatpush.bf16.msra.mxu0 %v164
    %186 = vmatpush.bf16.msra.mxu0 %v163
    %187 = vmatmul.bf16.gmra.mxu0 %v129
    %v188 = vpop.f32.mrf.mxu0
    %v189 = vadd.f32 %v130, %v188
    %v190 = vpop.f32.mrf.mxu0
    %191 = vdwg.mxu0
    %v192 = vmax.f32 %v189, 0.0
    %v193 = vld [vmem:[#allocation2 + $0x80] sm:$0xf]
    %v194 = vld [vmem:[#allocation2 + $0x84] sm:$0xf]
    %v195 = vld [vmem:[#allocation2 + $0x88] sm:$0xf]
    %v196 = vld [vmem:[#allocation2 + $0x8c] sm:$0xf]
    %v197 = vld [vmem:[#allocation2 + $0x90] sm:$0xf]
    %v198 = vld [vmem:[#allocation2 + $0x94] sm:$0xf]
    %v199 = vld [vmem:[#allocation2 + $0x98] sm:$0xf]
    %v200 = vld [vmem:[#allocation2 + $0x9c] sm:$0xf]
    %v201 = vld [vmem:[#allocation2 + $0xa0] sm:$0xf]
    %v202 = vld [vmem:[#allocation2 + $0xa4] sm:$0xf]
    %v203 = vld [vmem:[#allocation2 + $0xa8] sm:$0xf]
    %v204 = vld [vmem:[#allocation2 + $0xac] sm:$0xf]
    %v205 = vld [vmem:[#allocation2 + $0xb0] sm:$0xf]
    %v206 = vld [vmem:[#allocation2 + $0xb4] sm:$0xf]
    %v207 = vld [vmem:[#allocation2 + $0xb8] sm:$0xf]
    %v208 = vld [vmem:[#allocation2 + $0xbc] sm:$0xf]
    %v209 = vld [vmem:[%s2 + $0x2] sm:$0x1]
    %v210 = vpack.c.bf16 %v192, %v192
    %v211 = vperm.slane %v209, 0
    %v228 = vunpack.c.l.b16 %v193
    %v229 = vunpack.c.l.b16 %v194
    %v230 = vunpack.c.l.b16 %v195
    %v231 = vunpack.c.l.b16 %v196
    %v232 = vunpack.c.l.b16 %v197
    %v233 = vunpack.c.l.b16 %v198
    %v234 = vunpack.c.l.b16 %v199
    %v235 = vunpack.c.l.b16 %v200
    %v236 = vunpack.c.l.b16 %v201
    %v237 = vunpack.c.l.b16 %v202
    %v238 = vunpack.c.l.b16 %v203
    %v239 = vunpack.c.l.b16 %v204
    %v240 = vunpack.c.l.b16 %v205
    %v241 = vunpack.c.l.b16 %v206
    %v242 = vunpack.c.l.b16 %v207
    %v243 = vunpack.c.l.b16 %v208
    %v244 = vpack.c.b16 %v229, %v228
    %v245 = vpack.c.b16 %v231, %v230
    %v246 = vpack.c.b16 %v233, %v232
    %v247 = vpack.c.b16 %v235, %v234
    %v248 = vpack.c.b16 %v237, %v236
    %v249 = vpack.c.b16 %v239, %v238
    %v250 = vpack.c.b16 %v241, %v240
    %v251 = vpack.c.b16 %v243, %v242
    %260 = vmatpush.bf16.msra.mxu0 %v251
    %261 = vmatpush.bf16.msra.mxu0 %v250
    %262 = vmatpush.bf16.msra.mxu0 %v249
    %263 = vmatpush.bf16.msra.mxu0 %v248
    %264 = vmatpush.bf16.msra.mxu0 %v247
    %265 = vmatpush.bf16.msra.mxu0 %v246
    %266 = vmatpush.bf16.msra.mxu0 %v245
    %267 = vmatpush.bf16.msra.mxu0 %v244
    %268 = vmatmul.bf16.gmra.mxu0 %v210
    %v269 = vpop.f32.mrf.mxu0
    %v270 = vadd.f32 %v211, %v269
    %v271 = vpop.f32.mrf.mxu0
    %272 = vdwg.mxu0
    %273 = vst [vmem:[%s3] sm:$0xff] %v270
    // Predicated region
    $region18: #{neural_net_forward.1} parent=1 // pred_check
      _
    $region19: #{neural_net_forward.1} parent=1 // pred_check_branch
      %275 = sbr.rel (0) target = $region21
    $region20: #{neural_net_forward.1} parent=1 // pred_region
      _
    $region21: #{neural_net_forward.1} parent=1 // pred_fallthru
      _
    // Predicated region
    $region22: #{neural_net_forward.1} parent=1 // pred_check
      _
    $region23: #{neural_net_forward.1} parent=1 // pred_check_branch
      %277 = sbr.rel (0) target = $region25
    $region24: #{neural_net_forward.1} parent=1 // pred_region
      _
    $region25: #{neural_net_forward.1} parent=1 // pred_fallthru
      _
    %278 = vsyncpa [#allocation3], 1

</llo_original>
